<compile_context>
chip_gen: v5e
topology: v5e:2x2
jax: 0.10.0
libtpu: 0.0.40
codegen_flags: <defaults>
</compile_context>

<pallas_src>
import jax
import jax.numpy as jnp
from jax import lax
from jax.experimental import pallas as pl
from jax.experimental.pallas import tpu as pltpu


_TT_MAX = 16  # max LSTM timesteps folded into one grid step


# ----------------------------------------------------------------------------
# Small helpers
# ----------------------------------------------------------------------------
def _round_up(x, m):
    return ((x + m - 1) // m) * m


def _elu(x):
    # ELU(alpha=1): x if x > 0 else exp(x) - 1
    return jnp.where(x > 0.0, x, jnp.exp(jnp.minimum(x, 0.0)) - 1.0)


def _sigmoid_eup(x):
    # sigmoid via tanh: runs on the EUP slot, avoids an f32 VALU divide.
    return 0.5 * (jnp.tanh(0.5 * x) + 1.0)


# ----------------------------------------------------------------------------
# Fused Pallas kernel.  One grid step = Tt recurrent LSTM steps for N nets
# (actor and/or critic) + one batched MLP pass over all Tt*B rows per net.
# ----------------------------------------------------------------------------
def _make_kernel(H, DM, L, N, B, Tt, T_total, masked):
    def kernel(x_ref, hc0_ref, wx_ref, wh_ref, b_ref, mw_ref, mb_ref,
               y_ref, st_ref, hseq_ref):
        # st_ref: final-state output (2N, B, H), index-map constant over the grid
        #         -> VMEM-resident accumulator carrying [h, c] per net.
        tb = pl.program_id(0)

        @pl.when(tb == 0)
        def _init():
            st_ref[...] = hc0_ref[...]

        def step(t, carry):
            for n in range(N):
                h = st_ref[2 * n]                      # (B, H)
                c = st_ref[2 * n + 1]                  # (B, H)
                xt = x_ref[n, t]                       # (B, XP)
                # Two MXU pushes instead of a per-step [x | h] concat.
                gates = (
                    jnp.dot(xt, wx_ref[n], preferred_element_type=jnp.float32)
                    + jnp.dot(h, wh_ref[n], preferred_element_type=jnp.float32)
                    + b_ref[n])                        # (B, 4H), order [i,f,g,o]
                i_g = _sigmoid_eup(gates[:, 0 * H:1 * H])
                f_g = _sigmoid_eup(gates[:, 1 * H:2 * H])
                g_g = jnp.tanh(gates[:, 2 * H:3 * H])
                o_g = _sigmoid_eup(gates[:, 3 * H:4 * H])
                c_new = f_g * c + i_g * g_g
                h_new = o_g * jnp.tanh(c_new)
                if masked:
                    # Steps beyond the true sequence length keep the old state.
                    valid = (tb * Tt + t) < T_total
                    h_new = jnp.where(valid, h_new, h)
                    c_new = jnp.where(valid, c_new, c)
                st_ref[2 * n] = h_new
                st_ref[2 * n + 1] = c_new
                # Stash this step's h into the flattened (Tt*B, DM) row buffer.
                if DM > H:
                    h_store = jnp.concatenate(
                        [h_new, jnp.zeros((B, DM - H), jnp.float32)], axis=-1)
                else:
                    h_store = h_new
                off = pl.multiple_of(t * B, B)
                hseq_ref[n, pl.ds(off, B), :] = h_store
            return carry

        lax.fori_loop(0, Tt, step, 0, unroll=True)

        # MLP head, hoisted out of the recurrence: one matmul per layer over all
        # Tt*B rows.  Padded weight rows/cols are zero so padding lanes stay 0.
        for n in range(N):
            a = hseq_ref[n]                            # (Tt*B, DM)
            for layer in range(L):
                a = (jnp.dot(a, mw_ref[n, layer],
                             preferred_element_type=jnp.float32)
                     + mb_ref[n, layer])
                if layer < L - 1:
                    a = _elu(a)
            y_ref[n] = a                               # (Tt*B, DM)

    return kernel


def _build_forward_fn():
    """Jitted: (obs seqs, hidden states, packed slabs) -> (outputs, new states).

    xs  : tuple of N arrays, each (T, B, X_n)   (actor and/or critic obs)
    hcs : tuple of 2N arrays, each (B, H)       (h, c per net)
    """

    def forward(xs, hcs, wx, wh, bias, mw, mb):
        N = len(xs)
        XP = wx.shape[1]
        H = wh.shape[1]
        L = mw.shape[1]
        DM = mw.shape[-1]
        T, B = xs[0].shape[0], xs[0].shape[1]
        Bp = _round_up(B, 8)
        Tt = min(T, _TT_MAX)
        n_blocks = -(-T // Tt)
        Tp = n_blocks * Tt
        masked = Tp != T

        def prep(x):
            return jnp.pad(
                x.astype(jnp.float32),
                ((0, Tp - T), (0, Bp - B), (0, XP - x.shape[-1])))

        x = jnp.stack([prep(xi) for xi in xs], axis=0)          # (N, Tp, Bp, XP)
        hc0 = jnp.stack(hcs, axis=0).astype(jnp.float32)        # (2N, B, H)
        hc0 = jnp.pad(hc0, ((0, 0), (0, Bp - B), (0, 0)))       # (2N, Bp, H)

        kernel = _make_kernel(H, DM, L, N, Bp, Tt, T, masked)
        y, st = pl.pallas_call(
            kernel,
            grid=(n_blocks,),
            in_specs=[
                # per time-block obs slab
                pl.BlockSpec((N, Tt, Bp, XP), lambda tb: (0, tb, 0, 0)),
                # initial states: resident, read only at tb == 0
                pl.BlockSpec((2 * N, Bp, H), lambda tb: (0, 0, 0)),
                # packed params: constant over the grid -> stay VMEM-resident
                pl.BlockSpec((N, XP, 4 * H), lambda tb: (0, 0, 0)),
                pl.BlockSpec((N, H, 4 * H), lambda tb: (0, 0, 0)),
                pl.BlockSpec((N, 1, 4 * H), lambda tb: (0, 0, 0)),
                pl.BlockSpec((N, L, DM, DM), lambda tb: (0, 0, 0, 0)),
                pl.BlockSpec((N, L, 1, DM), lambda tb: (0, 0, 0, 0)),
            ],
            out_specs=(
                # per time-block MLP outputs, rows flattened to (Tt*B, DM)
                pl.BlockSpec((N, Tt * Bp, DM), lambda tb: (0, tb, 0)),
                # final recurrent state (resident accumulator)
                pl.BlockSpec((2 * N, Bp, H), lambda tb: (0, 0, 0)),
            ),
            out_shape=(
                jax.ShapeDtypeStruct((N, Tp * Bp, DM), jnp.float32),
                jax.ShapeDtypeStruct((2 * N, Bp, H), jnp.float32),
            ),
            scratch_shapes=[pltpu.VMEM((N, Tt * Bp, DM), jnp.float32)],
            compiler_params=pltpu.CompilerParams(
                dimension_semantics=("arbitrary",)),
        )(x, hc0, wx, wh, bias, mw, mb)

        y = y.reshape(N, Tp, Bp, DM)[:, :T, :B, :]               # (N, T, B, DM)
        st = st[:, :B, :]                                        # (2N, B, H)
        return y, tuple(st[i] for i in range(2 * N))

    return jax.jit(forward)


# ----------------------------------------------------------------------------
# Parameter construction (deterministic, PyTorch-like uniform fan-in init).
# ----------------------------------------------------------------------------
def _uniform(key, shape, bound):
    return jax.random.uniform(key, shape, jnp.float32, -bound, bound)


def init_lstm_params(key, in_dim, hidden):
    k = jax.random.split(key, 4)
    bound = 1.0 / float(hidden) ** 0.5
    # Stored pre-transposed: (in, 4H), (H, 4H); biases (1, 4H). Gate order [i,f,g,o].
    w_ih = _uniform(k[0], (in_dim, 4 * hidden), bound)
    w_hh = _uniform(k[1], (hidden, 4 * hidden), bound)
    b_ih = _uniform(k[2], (1, 4 * hidden), bound)
    b_hh = _uniform(k[3], (1, 4 * hidden), bound)
    return [w_ih, w_hh, b_ih, b_hh]


def init_mlp_params(key, in_dim, hidden_dims, out_dim):
    dims = [in_dim] + list(hidden_dims) + [out_dim]
    params = []
    keys = jax.random.split(key, 2 * (len(dims) - 1))
    for li in range(len(dims) - 1):
        bound = 1.0 / float(dims[li]) ** 0.5
        w = _uniform(keys[2 * li], (dims[li], dims[li + 1]), bound)   # (in, out)
        b = _uniform(keys[2 * li + 1], (1, dims[li + 1]), bound)      # (1, out)
        params += [w, b]
    return params


# ----------------------------------------------------------------------------
# ActorCriticRecurrent (JAX / Pallas)
# ----------------------------------------------------------------------------
class ActorCriticRecurrentPallas:
    is_recurrent = True

    def __init__(
        self,
        obs,
        obs_groups,
        num_actions,
        actor_hidden_dims=(32, 32, 32),
        critic_hidden_dims=(32, 32, 32),
        init_noise_std=1.0,
        noise_std_type="scalar",
        rnn_hidden_dim=32,
        seed=0,
    ):
        # TODO(synk): fused kernel assumes equal actor/critic MLP depth (true for
        # the module defaults); unequal depths would need per-net layer counts.
        assert len(actor_hidden_dims) == len(critic_hidden_dims)

        self.obs_groups = obs_groups
        self.num_actions = num_actions
        H = self.rnn_hidden_dim = rnn_hidden_dim

        self.num_actor_obs = sum(obs[g].shape[-1] for g in obs_groups["policy"])
        self.num_critic_obs = sum(obs[g].shape[-1] for g in obs_groups["critic"])
        batch = obs[obs_groups["policy"][0]].shape[0]

        # --- logical (unpacked) parameters, used by the pure-JAX reference ----
        key = jax.random.PRNGKey(seed)
        ka, kc, kma, kmc = jax.random.split(key, 4)
        self.memory_a_params = init_lstm_params(ka, self.num_actor_obs, H)
        self.memory_c_params = init_lstm_params(kc, self.num_critic_obs, H)
        self.actor_params = init_mlp_params(kma, H, actor_hidden_dims, num_actions)
        self.critic_params = init_mlp_params(kmc, H, critic_hidden_dims, 1)
        self.n_mlp_layers = len(self.actor_params) // 2

        # --- packed kernel slabs ----------------------------------------------
        all_widths = [H, num_actions, 1, *actor_hidden_dims, *critic_hidden_dims]
        self.XP = _round_up(max(self.num_actor_obs, self.num_critic_obs), 8)
        self.DM = _round_up(max(all_widths), 8)
        self.packed_both = self._pack_params()
        self.packed_actor = tuple(p[0:1] for p in self.packed_both)
        self.packed_critic = tuple(p[1:2] for p in self.packed_both)

        # --- noise std parameter -----------------------------------------------
        self.noise_std_type = noise_std_type
        if noise_std_type == "scalar":
            self.std = init_noise_std * jnp.ones((num_actions,), jnp.float32)
        elif noise_std_type == "log":
            self.log_std = jnp.log(init_noise_std * jnp.ones((num_actions,), jnp.float32))
        else:
            raise ValueError(f"Unknown standard deviation type: {noise_std_type}")

        # --- recurrent states (reset() -> zeros) --------------------------------
        self.h_a = jnp.zeros((batch, H), jnp.float32)
        self.c_a = jnp.zeros((batch, H), jnp.float32)
        self.h_c = jnp.zeros((batch, H), jnp.float32)
        self.c_c = jnp.zeros((batch, H), jnp.float32)

        self._forward = _build_forward_fn()

    # --- packing ---------------------------------------------------------------
    def _pack_params(self):
        H, XP, DM, L = self.rnn_hidden_dim, self.XP, self.DM, self.n_mlp_layers
        wx = jnp.zeros((2, XP, 4 * H), jnp.float32)
        wh = jnp.zeros((2, H, 4 * H), jnp.float32)
        bb = jnp.zeros((2, 1, 4 * H), jnp.float32)
        for n, prm in enumerate([self.memory_a_params, self.memory_c_params]):
            w_ih, w_hh, b_ih, b_hh = prm
            wx = wx.at[n, :w_ih.shape[0], :].set(w_ih)
            wh = wh.at[n].set(w_hh)
            bb = bb.at[n].set(b_ih + b_hh)

        mw = jnp.zeros((2, L, DM, DM), jnp.float32)
        mb = jnp.zeros((2, L, 1, DM), jnp.float32)
        for n, prm in enumerate([self.actor_params, self.critic_params]):
            for li in range(L):
                w = prm[2 * li]
                b = prm[2 * li + 1]
                mw = mw.at[n, li, :w.shape[0], :w.shape[1]].set(w)
                mb = mb.at[n, li, :, :b.shape[1]].set(b)
        return (wx, wh, bb, mw, mb)

    # --- obs plumbing (Identity normalizers) ------------------------------------
    def get_actor_obs(self, obs):
        return jnp.concatenate([obs[g] for g in self.obs_groups["policy"]], axis=-1)

    def get_critic_obs(self, obs):
        return jnp.concatenate([obs[g] for g in self.obs_groups["critic"]], axis=-1)

    # --- forward paths -----------------------------------------------------------
    def act_inference(self, obs):
        x = self.get_actor_obs(obs)[None]                 # (1, B, obs_a)
        y, st = self._forward((x,), (self.h_a, self.c_a), *self.packed_actor)
        self.h_a, self.c_a = st                           # only the actor memory advances
        return y[0, 0, :, :self.num_actions]

    def evaluate(self, obs):
        x = self.get_critic_obs(obs)[None]                # (1, B, obs_c)
        y, st = self._forward((x,), (self.h_c, self.c_c), *self.packed_critic)
        self.h_c, self.c_c = st                           # only the critic memory advances
        return y[0, 0, :, :1]

    def act_and_evaluate(self, obs):
        """One fused kernel launch: action mean + value, advances both memories."""
        x_a = self.get_actor_obs(obs)[None]
        x_c = self.get_critic_obs(obs)[None]
        y, st = self._forward((x_a, x_c),
                              (self.h_a, self.c_a, self.h_c, self.c_c),
                              *self.packed_both)
        self.h_a, self.c_a, self.h_c, self.c_c = st
        return y[0, 0, :, :self.num_actions], y[1, 0, :, :1]

    def rollout(self, obs_seq):
        """T timesteps, time-blocked into ceil(T/Tt) grid steps in one pallas_call."""
        x_a = jnp.concatenate([obs_seq[g] for g in self.obs_groups["policy"]], -1)
        x_c = jnp.concatenate([obs_seq[g] for g in self.obs_groups["critic"]], -1)
        y, st = self._forward((x_a, x_c),
                              (self.h_a, self.c_a, self.h_c, self.c_c),
                              *self.packed_both)
        self.h_a, self.c_a, self.h_c, self.c_c = st
        return y[0, :, :, :self.num_actions], y[1, :, :, :1]

    def action_std(self, mean):
        if self.noise_std_type == "scalar":
            return jnp.broadcast_to(self.std, mean.shape)
        return jnp.broadcast_to(jnp.exp(self.log_std), mean.shape)

    def get_hidden_states(self):
        return ((self.h_a, self.c_a), (self.h_c, self.c_c))

    def reset(self, dones=None):
        if dones is None:
            self.h_a = jnp.zeros_like(self.h_a)
            self.c_a = jnp.zeros_like(self.c_a)
            self.h_c = jnp.zeros_like(self.h_c)
            self.c_c = jnp.zeros_like(self.c_c)
        else:
            keep = (1.0 - dones.astype(jnp.float32))[:, None]
            self.h_a, self.c_a = self.h_a * keep, self.c_a * keep
            self.h_c, self.c_c = self.h_c * keep, self.c_c * keep

    # TODO(synk): act() (stochastic sampling / log_prob / entropy of Normal) is
    # plain-JAX distribution math outside the Pallas hot path; not implemented.


# ----------------------------------------------------------------------------
# Pure-JAX reference for validation (unpacked params, standard LSTM + MLP).
# ----------------------------------------------------------------------------
def ref_net(x, h0, c0, lstm_params, mlp_params):
    w_ih, w_hh, b_ih, b_hh = lstm_params
    H = h0.shape[-1]
    gates = x @ w_ih + b_ih + h0 @ w_hh + b_hh
    i = jax.nn.sigmoid(gates[:, 0 * H:1 * H])
    f = jax.nn.sigmoid(gates[:, 1 * H:2 * H])
    g = jnp.tanh(gates[:, 2 * H:3 * H])
    o = jax.nn.sigmoid(gates[:, 3 * H:4 * H])
    c1 = f * c0 + i * g
    h1 = o * jnp.tanh(c1)
    a = h1
    n_layers = len(mlp_params) // 2
    for li in range(n_layers):
        a = a @ mlp_params[2 * li] + mlp_params[2 * li + 1]
        if li < n_layers - 1:
            a = _elu(a)
    return a, h1, c1


def _assert_close(name, got, ref, atol=3e-5, rtol=1e-4):
    assert got.shape == ref.shape, (name, got.shape, ref.shape)
    ok = bool(jnp.allclose(got, ref, atol=atol, rtol=rtol))
    assert ok, (name, float(jnp.max(jnp.abs(got - ref))))


if __name__ == "__main__":
    # Small deterministic problem: batch=8, policy obs 24-D, critic obs 24+8=32-D,
    # rnn hidden = 32, MLP hidden = [32, 32, 32], num_actions = 8.
    key = jax.random.PRNGKey(0)
    k1, k2, k3 = jax.random.split(key, 3)
    batch = 8
    obs = {
        "policy": jax.random.normal(k1, (batch, 24), jnp.float32),
        "privileged": jax.random.normal(k2, (batch, 8), jnp.float32),
    }
    obs_groups = {"policy": ["policy"], "critic": ["policy", "privileged"]}

    model = ActorCriticRecurrentPallas(
        obs, obs_groups, num_actions=8,
        actor_hidden_dims=(32, 32, 32), critic_hidden_dims=(32, 32, 32),
        rnn_hidden_dim=32, seed=0)

    h_a0, c_a0, h_c0, c_c0 = model.h_a, model.c_a, model.h_c, model.c_c

    # --- step 1: act_inference + evaluate (single-net kernels, T=1) -----------
    mean1 = model.act_inference(obs)
    val1 = model.evaluate(obs)
    jax.block_until_ready((mean1, val1, model.h_a, model.c_a, model.h_c, model.c_c))
    assert mean1.shape == (batch, 8) and val1.shape == (batch, 1)

    x_a = model.get_actor_obs(obs)
    x_c = model.get_critic_obs(obs)
    r_mean1, r_ha1, r_ca1 = ref_net(x_a, h_a0, c_a0, model.memory_a_params, model.actor_params)
    r_val1, r_hc1, r_cc1 = ref_net(x_c, h_c0, c_c0, model.memory_c_params, model.critic_params)
    _assert_close("mean1", mean1, r_mean1)
    _assert_close("value1", val1, r_val1)
    _assert_close("h_a1", model.h_a, r_ha1)
    _assert_close("c_a1", model.c_a, r_ca1)
    _assert_close("h_c1", model.h_c, r_hc1)
    _assert_close("c_c1", model.c_c, r_cc1)

    # --- step 2: fused act_and_evaluate (both nets, one launch, T=1) ----------
    mean2, val2 = model.act_and_evaluate(obs)
    jax.block_until_ready((mean2, val2))
    r_mean2, r_ha2, r_ca2 = ref_net(x_a, r_ha1, r_ca1, model.memory_a_params, model.actor_params)
    r_val2, r_hc2, r_cc2 = ref_net(x_c, r_hc1, r_cc1, model.memory_c_params, model.critic_params)
    _assert_close("mean2", mean2, r_mean2)
    _assert_close("value2", val2, r_val2)
    _assert_close("h_a2", model.h_a, r_ha2)
    _assert_close("c_c2", model.c_c, r_cc2)

    # --- step 3: T-step rollout, time-blocked (Tt=16 -> 2 grid steps + tail mask)
    model.reset()
    T = 20
    k4, k5 = jax.random.split(k3)
    obs_seq = {
        "policy": jax.random.normal(k4, (T, batch, 24), jnp.float32),
        "privileged": jax.random.normal(k5, (T, batch, 8), jnp.float32),
    }
    mean_seq, value_seq = model.rollout(obs_seq)
    jax.block_until_ready((mean_seq, value_seq))
    assert mean_seq.shape == (T, batch, 8) and value_seq.shape == (T, batch, 1)

    xa_seq = jnp.concatenate([obs_seq[g] for g in obs_groups["policy"]], -1)
    xc_seq = jnp.concatenate([obs_seq[g] for g in obs_groups["critic"]], -1)
    ha, ca, hc, cc = h_a0, c_a0, h_c0, c_c0
    for t in range(T):
        m_t, ha, ca = ref_net(xa_seq[t], ha, ca, model.memory_a_params, model.actor_params)
        v_t, hc, cc = ref_net(xc_seq[t], hc, cc, model.memory_c_params, model.critic_params)
        _assert_close(f"mean_seq[{t}]", mean_seq[t], m_t, atol=1e-4, rtol=1e-4)
        _assert_close(f"value_seq[{t}]", value_seq[t], v_t, atol=1e-4, rtol=1e-4)
    _assert_close("h_a_roll", model.h_a, ha, atol=1e-4, rtol=1e-4)
    _assert_close("c_a_roll", model.c_a, ca, atol=1e-4, rtol=1e-4)
    _assert_close("h_c_roll", model.h_c, hc, atol=1e-4, rtol=1e-4)
    _assert_close("c_c_roll", model.c_c, cc, atol=1e-4, rtol=1e-4)

    std = model.action_std(mean1)
    assert std.shape == mean1.shape

    print("KERNEL_OK")
</pallas_src>

<mosaic_0001>
module attributes {stable_mosaic.version = 11 : i64} {
  func.func @kernel(%arg0: i32, %arg1: memref<1x1x8x32xf32, #tpu.memory_space<vmem>>, %arg2: memref<2x8x32xf32, #tpu.memory_space<vmem>>, %arg3: memref<1x32x128xf32, #tpu.memory_space<vmem>>, %arg4: memref<1x32x128xf32, #tpu.memory_space<vmem>>, %arg5: memref<1x1x128xf32, #tpu.memory_space<vmem>>, %arg6: memref<1x4x32x32xf32, #tpu.memory_space<vmem>>, %arg7: memref<1x4x1x32xf32, #tpu.memory_space<vmem>>, %arg8: memref<1x8x32xf32, #tpu.memory_space<vmem>>, %arg9: memref<2x8x32xf32, #tpu.memory_space<vmem>>, %arg10: memref<1x8x32xf32, #tpu.memory_space<vmem>>) attributes {dimension_semantics = [#tpu.dimension_semantics<arbitrary>], iteration_bounds = array<i64: 1>, scalar_prefetch = 0 : i64, scratch_operands = 1 : i64, tpu.core_type = #tpu.core_type<tc>, window_params = [{transform_indices = @transform_0, window_bounds = array<i64: 1, 1, 8, 32>}, {pipeline_mode = #tpu.pipeline_mode<synchronous>, transform_indices = @transform_1, window_bounds = array<i64: 2, 8, 32>}, {pipeline_mode = #tpu.pipeline_mode<synchronous>, transform_indices = @transform_2, window_bounds = array<i64: 1, 32, 128>}, {pipeline_mode = #tpu.pipeline_mode<synchronous>, transform_indices = @transform_3, window_bounds = array<i64: 1, 32, 128>}, {pipeline_mode = #tpu.pipeline_mode<synchronous>, transform_indices = @transform_4, window_bounds = array<i64: 1, 1, 128>}, {pipeline_mode = #tpu.pipeline_mode<synchronous>, transform_indices = @transform_5, window_bounds = array<i64: 1, 4, 32, 32>}, {pipeline_mode = #tpu.pipeline_mode<synchronous>, transform_indices = @transform_6, window_bounds = array<i64: 1, 4, 1, 32>}, {transform_indices = @transform_7, window_bounds = array<i64: 1, 8, 32>}, {pipeline_mode = #tpu.pipeline_mode<synchronous>, transform_indices = @transform_8, window_bounds = array<i64: 2, 8, 32>}]} {
    %c0_i32 = arith.constant 0 : i32
    %0 = arith.cmpi eq, %arg0, %c0_i32 : i32
    %1 = arith.extui %0 : i1 to i32
    %c0_i32_0 = arith.constant 0 : i32
    %2 = arith.cmpi ne, %1, %c0_i32_0 : i32
    scf.if %2 {
      %c0_85 = arith.constant 0 : index
      %c0_86 = arith.constant 0 : index
      %c0_87 = arith.constant 0 : index
      %121 = vector.load %arg2[%c0_85, %c0_86, %c0_87] : memref<2x8x32xf32, #tpu.memory_space<vmem>>, vector<2x8x32xf32>
      %c0_88 = arith.constant 0 : index
      %c0_89 = arith.constant 0 : index
      %c0_90 = arith.constant 0 : index
      %122 = vector.load %arg9[%c0_88, %c0_89, %c0_90] : memref<2x8x32xf32, #tpu.memory_space<vmem>>, vector<2x8x32xf32>
      tpu.vector_store %arg9[%c0_88, %c0_89, %c0_90], %121 {strides = array<i32>} : memref<2x8x32xf32, #tpu.memory_space<vmem>>, vector<2x8x32xf32>,
    } else {
    }
    %c0_i32_1 = arith.constant 0 : i32
    %c0 = arith.constant 0 : index
    %c0_2 = arith.constant 0 : index
    %c0_3 = arith.constant 0 : index
    %3 = vector.load %arg9[%c0, %c0_2, %c0_3] : memref<2x8x32xf32, #tpu.memory_space<vmem>>, vector<1x8x32xf32>
    %4 = vector.shape_cast %3 : vector<1x8x32xf32> to vector<8x32xf32>
    %c1 = arith.constant 1 : index
    %c0_4 = arith.constant 0 : index
    %c0_5 = arith.constant 0 : index
    %5 = vector.load %arg9[%c1, %c0_4, %c0_5] : memref<2x8x32xf32, #tpu.memory_space<vmem>>, vector<1x8x32xf32>
    %6 = vector.shape_cast %5 : vector<1x8x32xf32> to vector<8x32xf32>
    %c0_6 = arith.constant 0 : index
    %7 = arith.index_cast %c0_i32_1 : i32 to index
    %c0_7 = arith.constant 0 : index
    %c0_8 = arith.constant 0 : index
    %8 = vector.load %arg1[%c0_6, %7, %c0_7, %c0_8] : memref<1x1x8x32xf32, #tpu.memory_space<vmem>>, vector<1x1x8x32xf32>
    %9 = vector.shape_cast %8 : vector<1x1x8x32xf32> to vector<8x32xf32>
    %c0_9 = arith.constant 0 : index
    %c0_10 = arith.constant 0 : index
    %c0_11 = arith.constant 0 : index
    %10 = vector.load %arg3[%c0_9, %c0_10, %c0_11] : memref<1x32x128xf32, #tpu.memory_space<vmem>>, vector<1x32x128xf32>
    %11 = vector.shape_cast %10 : vector<1x32x128xf32> to vector<32x128xf32>
    %cst = arith.constant dense<0.000000e+00> : vector<8x128xf32>
    %12 = tpu.matmul %9, %11, %cst {dimension_numbers = #tpu.dot_dimension_numbers<[1], [0], [0], [1], [0, 0, 1, 1], [], []>} : vector<8x32xf32>, vector<32x128xf32>, vector<8x128xf32> -> vector<8x128xf32>
    %c0_12 = arith.constant 0 : index
    %c0_13 = arith.constant 0 : index
    %c0_14 = arith.constant 0 : index
    %13 = vector.load %arg4[%c0_12, %c0_13, %c0_14] : memref<1x32x128xf32, #tpu.memory_space<vmem>>, vector<1x32x128xf32>
    %14 = vector.shape_cast %13 : vector<1x32x128xf32> to vector<32x128xf32>
    %cst_15 = arith.constant dense<0.000000e+00> : vector<8x128xf32>
    %15 = tpu.matmul %4, %14, %cst_15 {dimension_numbers = #tpu.dot_dimension_numbers<[1], [0], [0], [1], [0, 0, 1, 1], [], []>} : vector<8x32xf32>, vector<32x128xf32>, vector<8x128xf32> -> vector<8x128xf32>
    %16 = arith.addf %12, %15 : vector<8x128xf32>
    %c0_16 = arith.constant 0 : index
    %c0_17 = arith.constant 0 : index
    %c0_18 = arith.constant 0 : index
    %17 = vector.load %arg5[%c0_16, %c0_17, %c0_18] : memref<1x1x128xf32, #tpu.memory_space<vmem>>, vector<1x1x128xf32>
    %18 = vector.shape_cast %17 : vector<1x1x128xf32> to vector<1x128xf32>
    %19 = vector.broadcast %18 : vector<1x128xf32> to vector<8x128xf32>
    %20 = arith.addf %16, %19 : vector<8x128xf32>
    %21 = vector.extract_strided_slice %20 {offsets = [0, 0], sizes = [8, 32], strides = [1, 1]} : vector<8x128xf32> to vector<8x32xf32>
    %cst_19 = arith.constant 5.000000e-01 : f32
    %22 = vector.broadcast %cst_19 : f32 to vector<8x32xf32>
    %23 = arith.mulf %22, %21 : vector<8x32xf32>
    %24 = math.tanh %23 : vector<8x32xf32>
    %cst_20 = arith.constant 1.000000e+00 : f32
    %25 = vector.broadcast %cst_20 : f32 to vector<8x32xf32>
    %26 = arith.addf %24, %25 : vector<8x32xf32>
    %cst_21 = arith.constant 5.000000e-01 : f32
    %27 = vector.broadcast %cst_21 : f32 to vector<8x32xf32>
    %28 = arith.mulf %27, %26 : vector<8x32xf32>
    %29 = vector.extract_strided_slice %20 {offsets = [0, 32], sizes = [8, 32], strides = [1, 1]} : vector<8x128xf32> to vector<8x32xf32>
    %cst_22 = arith.constant 5.000000e-01 : f32
    %30 = vector.broadcast %cst_22 : f32 to vector<8x32xf32>
    %31 = arith.mulf %30, %29 : vector<8x32xf32>
    %32 = math.tanh %31 : vector<8x32xf32>
    %cst_23 = arith.constant 1.000000e+00 : f32
    %33 = vector.broadcast %cst_23 : f32 to vector<8x32xf32>
    %34 = arith.addf %32, %33 : vector<8x32xf32>
    %cst_24 = arith.constant 5.000000e-01 : f32
    %35 = vector.broadcast %cst_24 : f32 to vector<8x32xf32>
    %36 = arith.mulf %35, %34 : vector<8x32xf32>
    %37 = vector.extract_strided_slice %20 {offsets = [0, 64], sizes = [8, 32], strides = [1, 1]} : vector<8x128xf32> to vector<8x32xf32>
    %38 = math.tanh %37 : vector<8x32xf32>
    %39 = vector.extract_strided_slice %20 {offsets = [0, 96], sizes = [8, 32], strides = [1, 1]} : vector<8x128xf32> to vector<8x32xf32>
    %cst_25 = arith.constant 5.000000e-01 : f32
    %40 = vector.broadcast %cst_25 : f32 to vector<8x32xf32>
    %41 = arith.mulf %40, %39 : vector<8x32xf32>
    %42 = math.tanh %41 : vector<8x32xf32>
    %cst_26 = arith.constant 1.000000e+00 : f32
    %43 = vector.broadcast %cst_26 : f32 to vector<8x32xf32>
    %44 = arith.addf %42, %43 : vector<8x32xf32>
    %cst_27 = arith.constant 5.000000e-01 : f32
    %45 = vector.broadcast %cst_27 : f32 to vector<8x32xf32>
    %46 = arith.mulf %45, %44 : vector<8x32xf32>
    %47 = arith.mulf %36, %6 : vector<8x32xf32>
    %48 = arith.mulf %28, %38 : vector<8x32xf32>
    %49 = arith.addf %47, %48 : vector<8x32xf32>
    %50 = math.tanh %49 : vector<8x32xf32>
    %51 = arith.mulf %46, %50 : vector<8x32xf32>
    %c0_28 = arith.constant 0 : index
    %c0_29 = arith.constant 0 : index
    %c0_30 = arith.constant 0 : index
    %52 = vector.load %arg9[%c0_28, %c0_29, %c0_30] : memref<2x8x32xf32, #tpu.memory_space<vmem>>, vector<1x8x32xf32>
    %53 = vector.shape_cast %52 : vector<1x8x32xf32> to vector<8x32xf32>
    %54 = vector.shape_cast %51 : vector<8x32xf32> to vector<1x8x32xf32>
    tpu.vector_store %arg9[%c0_28, %c0_29, %c0_30], %54 {strides = array<i32>} : memref<2x8x32xf32, #tpu.memory_space<vmem>>, vector<1x8x32xf32>,
    %c1_31 = arith.constant 1 : index
    %c0_32 = arith.constant 0 : index
    %c0_33 = arith.constant 0 : index
    %55 = vector.load %arg9[%c1_31, %c0_32, %c0_33] : memref<2x8x32xf32, #tpu.memory_space<vmem>>, vector<1x8x32xf32>
    %56 = vector.shape_cast %55 : vector<1x8x32xf32> to vector<8x32xf32>
    %57 = vector.shape_cast %49 : vector<8x32xf32> to vector<1x8x32xf32>
    tpu.vector_store %arg9[%c1_31, %c0_32, %c0_33], %57 {strides = array<i32>} : memref<2x8x32xf32, #tpu.memory_space<vmem>>, vector<1x8x32xf32>,
    %c8_i32 = arith.constant 8 : i32
    %58 = arith.muli %c0_i32_1, %c8_i32 : i32
    %59 = tpu.assume_multiple %58, 8 : i32
    %c0_34 = arith.constant 0 : index
    %60 = arith.index_cast %59 : i32 to index
    %c0_35 = arith.constant 0 : index
    %61 = vector.load %arg10[%c0_34, %60, %c0_35] : memref<1x8x32xf32, #tpu.memory_space<vmem>>, vector<1x8x32xf32>
    %62 = vector.shape_cast %61 : vector<1x8x32xf32> to vector<8x32xf32>
    %63 = vector.shape_cast %51 : vector<8x32xf32> to vector<1x8x32xf32>
    tpu.vector_store %arg10[%c0_34, %60, %c0_35], %63 {strides = array<i32>} : memref<1x8x32xf32, #tpu.memory_space<vmem>>, vector<1x8x32xf32>,
    %c1_i32 = arith.constant 1 : i32
    %c0_36 = arith.constant 0 : index
    %c0_37 = arith.constant 0 : index
    %c0_38 = arith.constant 0 : index
    %64 = vector.load %arg10[%c0_36, %c0_37, %c0_38] : memref<1x8x32xf32, #tpu.memory_space<vmem>>, vector<1x8x32xf32>
    %65 = vector.shape_cast %64 : vector<1x8x32xf32> to vector<8x32xf32>
    %c0_39 = arith.constant 0 : index
    %c0_40 = arith.constant 0 : index
    %c0_41 = arith.constant 0 : index
    %c0_42 = arith.constant 0 : index
    %66 = vector.load %arg6[%c0_39, %c0_40, %c0_41, %c0_42] : memref<1x4x32x32xf32, #tpu.memory_space<vmem>>, vector<1x1x32x32xf32>
    %67 = vector.shape_cast %66 : vector<1x1x32x32xf32> to vector<32x32xf32>
    %cst_43 = arith.constant dense<0.000000e+00> : vector<8x32xf32>
    %68 = tpu.matmul %65, %67, %cst_43 {dimension_numbers = #tpu.dot_dimension_numbers<[1], [0], [0], [1], [0, 0, 1, 1], [], []>} : vector<8x32xf32>, vector<32x32xf32>, vector<8x32xf32> -> vector<8x32xf32>
    %c0_44 = arith.constant 0 : index
    %c0_45 = arith.constant 0 : index
    %c0_46 = arith.constant 0 : index
    %c0_47 = arith.constant 0 : index
    %69 = vector.load %arg7[%c0_44, %c0_45, %c0_46, %c0_47] : memref<1x4x1x32xf32, #tpu.memory_space<vmem>>, vector<1x1x1x32xf32>
    %70 = vector.shape_cast %69 : vector<1x1x1x32xf32> to vector<1x32xf32>
    %71 = vector.broadcast %70 : vector<1x32xf32> to vector<8x32xf32>
    %72 = arith.addf %68, %71 : vector<8x32xf32>
    %cst_48 = arith.constant 0.000000e+00 : f32
    %73 = vector.broadcast %cst_48 : f32 to vector<8x32xf32>
    %74 = arith.cmpf ogt, %72, %73 : vector<8x32xf32>
    %cst_49 = arith.constant 0.000000e+00 : f32
    %75 = vector.broadcast %cst_49 : f32 to vector<8x32xf32>
    %76 = arith.minimumf %72, %75 : vector<8x32xf32>
    %77 = math.exp %76 : vector<8x32xf32>
    %cst_50 = arith.constant 1.000000e+00 : f32
    %78 = vector.broadcast %cst_50 : f32 to vector<8x32xf32>
    %79 = arith.subf %77, %78 : vector<8x32xf32>
    %80 = arith.select %74, %72, %79 : vector<8x32xi1>, vector<8x32xf32>
    %c0_51 = arith.constant 0 : index
    %c1_52 = arith.constant 1 : index
    %c0_53 = arith.constant 0 : index
    %c0_54 = arith.constant 0 : index
    %81 = vector.load %arg6[%c0_51, %c1_52, %c0_53, %c0_54] : memref<1x4x32x32xf32, #tpu.memory_space<vmem>>, vector<1x1x32x32xf32>
    %82 = vector.shape_cast %81 : vector<1x1x32x32xf32> to vector<32x32xf32>
    %cst_55 = arith.constant dense<0.000000e+00> : vector<8x32xf32>
    %83 = tpu.matmul %80, %82, %cst_55 {dimension_numbers = #tpu.dot_dimension_numbers<[1], [0], [0], [1], [0, 0, 1, 1], [], []>} : vector<8x32xf32>, vector<32x32xf32>, vector<8x32xf32> -> vector<8x32xf32>
    %c0_56 = arith.constant 0 : index
    %c1_57 = arith.constant 1 : index
    %c0_58 = arith.constant 0 : index
    %c0_59 = arith.constant 0 : index
    %84 = vector.load %arg7[%c0_56, %c1_57, %c0_58, %c0_59] : memref<1x4x1x32xf32, #tpu.memory_space<vmem>>, vector<1x1x1x32xf32>
    %85 = vector.shape_cast %84 : vector<1x1x1x32xf32> to vector<1x32xf32>
    %86 = vector.broadcast %85 : vector<1x32xf32> to vector<8x32xf32>
    %87 = arith.addf %83, %86 : vector<8x32xf32>
    %cst_60 = arith.constant 0.000000e+00 : f32
    %88 = vector.broadcast %cst_60 : f32 to vector<8x32xf32>
    %89 = arith.cmpf ogt, %87, %88 : vector<8x32xf32>
    %cst_61 = arith.constant 0.000000e+00 : f32
    %90 = vector.broadcast %cst_61 : f32 to vector<8x32xf32>
    %91 = arith.minimumf %87, %90 : vector<8x32xf32>
    %92 = math.exp %91 : vector<8x32xf32>
    %cst_62 = arith.constant 1.000000e+00 : f32
    %93 = vector.broadcast %cst_62 : f32 to vector<8x32xf32>
    %94 = arith.subf %92, %93 : vector<8x32xf32>
    %95 = arith.select %89, %87, %94 : vector<8x32xi1>, vector<8x32xf32>
    %c0_63 = arith.constant 0 : index
    %c2 = arith.constant 2 : index
    %c0_64 = arith.constant 0 : index
    %c0_65 = arith.constant 0 : index
    %96 = vector.load %arg6[%c0_63, %c2, %c0_64, %c0_65] : memref<1x4x32x32xf32, #tpu.memory_space<vmem>>, vector<1x1x32x32xf32>
    %97 = vector.shape_cast %96 : vector<1x1x32x32xf32> to vector<32x32xf32>
    %cst_66 = arith.constant dense<0.000000e+00> : vector<8x32xf32>
    %98 = tpu.matmul %95, %97, %cst_66 {dimension_numbers = #tpu.dot_dimension_numbers<[1], [0], [0], [1], [0, 0, 1, 1], [], []>} : vector<8x32xf32>, vector<32x32xf32>, vector<8x32xf32> -> vector<8x32xf32>
    %c0_67 = arith.constant 0 : index
    %c2_68 = arith.constant 2 : index
    %c0_69 = arith.constant 0 : index
    %c0_70 = arith.constant 0 : index
    %99 = vector.load %arg7[%c0_67, %c2_68, %c0_69, %c0_70] : memref<1x4x1x32xf32, #tpu.memory_space<vmem>>, vector<1x1x1x32xf32>
    %100 = vector.shape_cast %99 : vector<1x1x1x32xf32> to vector<1x32xf32>
    %101 = vector.broadcast %100 : vector<1x32xf32> to vector<8x32xf32>
    %102 = arith.addf %98, %101 : vector<8x32xf32>
    %cst_71 = arith.constant 0.000000e+00 : f32
    %103 = vector.broadcast %cst_71 : f32 to vector<8x32xf32>
    %104 = arith.cmpf ogt, %102, %103 : vector<8x32xf32>
    %cst_72 = arith.constant 0.000000e+00 : f32
    %105 = vector.broadcast %cst_72 : f32 to vector<8x32xf32>
    %106 = arith.minimumf %102, %105 : vector<8x32xf32>
    %107 = math.exp %106 : vector<8x32xf32>
    %cst_73 = arith.constant 1.000000e+00 : f32
    %108 = vector.broadcast %cst_73 : f32 to vector<8x32xf32>
    %109 = arith.subf %107, %108 : vector<8x32xf32>
    %110 = arith.select %104, %102, %109 : vector<8x32xi1>, vector<8x32xf32>
    %c0_74 = arith.constant 0 : index
    %c3 = arith.constant 3 : index
    %c0_75 = arith.constant 0 : index
    %c0_76 = arith.constant 0 : index
    %111 = vector.load %arg6[%c0_74, %c3, %c0_75, %c0_76] : memref<1x4x32x32xf32, #tpu.memory_space<vmem>>, vector<1x1x32x32xf32>
    %112 = vector.shape_cast %111 : vector<1x1x32x32xf32> to vector<32x32xf32>
    %cst_77 = arith.constant dense<0.000000e+00> : vector<8x32xf32>
    %113 = tpu.matmul %110, %112, %cst_77 {dimension_numbers = #tpu.dot_dimension_numbers<[1], [0], [0], [1], [0, 0, 1, 1], [], []>} : vector<8x32xf32>, vector<32x32xf32>, vector<8x32xf32> -> vector<8x32xf32>
    %c0_78 = arith.constant 0 : index
    %c3_79 = arith.constant 3 : index
    %c0_80 = arith.constant 0 : index
    %c0_81 = arith.constant 0 : index
    %114 = vector.load %arg7[%c0_78, %c3_79, %c0_80, %c0_81] : memref<1x4x1x32xf32, #tpu.memory_space<vmem>>, vector<1x1x1x32xf32>
    %115 = vector.shape_cast %114 : vector<1x1x1x32xf32> to vector<1x32xf32>
    %116 = vector.broadcast %115 : vector<1x32xf32> to vector<8x32xf32>
    %117 = arith.addf %113, %116 : vector<8x32xf32>
    %c0_82 = arith.constant 0 : index
    %c0_83 = arith.constant 0 : index
    %c0_84 = arith.constant 0 : index
    %118 = vector.load %arg8[%c0_82, %c0_83, %c0_84] : memref<1x8x32xf32, #tpu.memory_space<vmem>>, vector<1x8x32xf32>
    %119 = vector.shape_cast %118 : vector<1x8x32xf32> to vector<8x32xf32>
    %120 = vector.shape_cast %117 : vector<8x32xf32> to vector<1x8x32xf32>
    tpu.vector_store %arg8[%c0_82, %c0_83, %c0_84], %120 {strides = array<i32>} : memref<1x8x32xf32, #tpu.memory_space<vmem>>, vector<1x8x32xf32>,
    return
  }
  func.func @transform_0(%arg0: i32) -> (i32, i32, i32, i32) {
    %c0_i32 = arith.constant 0 : i32
    %c0_i32_0 = arith.constant 0 : i32
    %c0_i32_1 = arith.constant 0 : i32
    %c0_i32_2 = arith.constant 0 : i32
    return %c0_i32, %arg0, %c0_i32_0, %c0_i32_1 : i32, i32, i32, i32
  }
  func.func @transform_1(%arg0: i32) -> (i32, i32, i32) {
    %c0_i32 = arith.constant 0 : i32
    %c0_i32_0 = arith.constant 0 : i32
    %c0_i32_1 = arith.constant 0 : i32
    %c0_i32_2 = arith.constant 0 : i32
    return %c0_i32, %c0_i32_0, %c0_i32_1 : i32, i32, i32
  }
  func.func @transform_2(%arg0: i32) -> (i32, i32, i32) {
    %c0_i32 = arith.constant 0 : i32
    %c0_i32_0 = arith.constant 0 : i32
    %c0_i32_1 = arith.constant 0 : i32
    %c0_i32_2 = arith.constant 0 : i32
    return %c0_i32, %c0_i32_0, %c0_i32_1 : i32, i32, i32
  }
  func.func @transform_3(%arg0: i32) -> (i32, i32, i32) {
    %c0_i32 = arith.constant 0 : i32
    %c0_i32_0 = arith.constant 0 : i32
    %c0_i32_1 = arith.constant 0 : i32
    %c0_i32_2 = arith.constant 0 : i32
    return %c0_i32, %c0_i32_0, %c0_i32_1 : i32, i32, i32
  }
  func.func @transform_4(%arg0: i32) -> (i32, i32, i32) {
    %c0_i32 = arith.constant 0 : i32
    %c0_i32_0 = arith.constant 0 : i32
    %c0_i32_1 = arith.constant 0 : i32
    %c0_i32_2 = arith.constant 0 : i32
    return %c0_i32, %c0_i32_0, %c0_i32_1 : i32, i32, i32
  }
  func.func @transform_5(%arg0: i32) -> (i32, i32, i32, i32) {
    %c0_i32 = arith.constant 0 : i32
    %c0_i32_0 = arith.constant 0 : i32
    %c0_i32_1 = arith.constant 0 : i32
    %c0_i32_2 = arith.constant 0 : i32
    %c0_i32_3 = arith.constant 0 : i32
    return %c0_i32, %c0_i32_0, %c0_i32_1, %c0_i32_2 : i32, i32, i32, i32
  }
  func.func @transform_6(%arg0: i32) -> (i32, i32, i32, i32) {
    %c0_i32 = arith.constant 0 : i32
    %c0_i32_0 = arith.constant 0 : i32
    %c0_i32_1 = arith.constant 0 : i32
    %c0_i32_2 = arith.constant 0 : i32
    %c0_i32_3 = arith.constant 0 : i32
    return %c0_i32, %c0_i32_0, %c0_i32_1, %c0_i32_2 : i32, i32, i32, i32
  }
  func.func @transform_7(%arg0: i32) -> (i32, i32, i32) {
    %c0_i32 = arith.constant 0 : i32
    %c0_i32_0 = arith.constant 0 : i32
    %c0_i32_1 = arith.constant 0 : i32
    return %c0_i32, %arg0, %c0_i32_0 : i32, i32, i32
  }
  func.func @transform_8(%arg0: i32) -> (i32, i32, i32) {
    %c0_i32 = arith.constant 0 : i32
    %c0_i32_0 = arith.constant 0 : i32
    %c0_i32_1 = arith.constant 0 : i32
    %c0_i32_2 = arith.constant 0 : i32
    return %c0_i32, %c0_i32_0, %c0_i32_1 : i32, i32, i32
  }
}

</mosaic_0001>

<llo_original>
// kernel: forward.1
$region0: #{forward.1}
  #allocation0 [shape = 'u32[]', space=smem, size = 0x4, offset = 0x4, fixed_abs, tag = 'smem constant byte address 0x4 - core index']
  #allocation1 [shape = 'u32[72,128]{1,0:T(1,128)}', space=vmem, size = 0x9000, scoped, tag = 'internal scratch']
  #allocation2 [shape = 'f32[1,8,32]{2,1,0:T(8,128)}', space=vmem, size = 0x1000, scoped, tag = 'scratch operand']
  %s0 = inlined_call_operand.vmem [shape: f32[1,1,8,32], index: 0, kind: input, shape index: {}]
  %s1 = inlined_call_operand.vmem [shape: f32[2,8,32], index: 1, kind: input, shape index: {}]
  %s2 = inlined_call_operand.vmem [shape: f32[1,32,128], index: 2, kind: input, shape index: {}]
  %s3 = inlined_call_operand.hbm [shape: f32[1,32,128], index: 3, kind: input, shape index: {}]
  %s4 = inlined_call_operand.vmem [shape: f32[1,1,128], index: 4, kind: input, shape index: {}]
  %s5 = inlined_call_operand.hbm [shape: f32[1,4,32,32], index: 5, kind: input, shape index: {}]
  %s6 = inlined_call_operand.vmem [shape: f32[1,4,1,32], index: 6, kind: input, shape index: {}]
  %s7 = inlined_call_operand.hbm [shape: f32[1,8,32], index: 7, kind: output, shape index: {0}]
  %s8 = inlined_call_operand.vmem [shape: f32[2,8,32], index: 8, kind: output, shape index: {1}]
  %9 = xla_tuple %s7, %s8
  %s10 = sld [smem:[#allocation0]]
  $region58: #{forward.1} parent=0
    _
  %s12 = ssub.s32 1, %s10
  %s13 = scalar_select 0, %s12, %s10
  $region1: #{forward.1} parent=0
    #allocation3 [shape = 'u8[16384]{0}', space=vmem, size = 0x4000, scoped, tag = 'input window, operand 3, single buffered']
    #allocation4 [shape = 's32[1]{0}', space=sflag, size = 0x4, scoped, tag = 'scoped memory for forward.1']
    #allocation5 [shape = 's32[1]{0}', space=sflag, size = 0x4, scoped, tag = 'scoped memory for forward.1']
    #allocation6 [shape = 'u8[65536]{0}', space=vmem, size = 0x10000, scoped, tag = 'input window, operand 5, single buffered']
    #allocation7 [shape = 's32[1]{0}', space=sflag, size = 0x4, scoped, tag = 'scoped memory for forward.1']
    #allocation8 [shape = 'u8[4096]{0}', space=vmem, size = 0x1000, scoped, tag = 'output window, operand 0, single buffered']
    %14 = vsyncpa [#allocation4], 0
    %15 = vsyncpa [#allocation7], 0
    %16 = vsyncpa [#allocation5], 0
    // Predicated region
    $region2: #{forward.1} parent=1 // pred_check
      _
    $region3: #{forward.1} parent=1 // pred_check_branch
      %18 = sbr.rel (0) target = $region5
    $region4: #{forward.1} parent=1 // pred_region
      _
    $region5: #{forward.1} parent=1 // pred_fallthru
      _
    // Predicated region
    $region6: #{forward.1} parent=1 // pred_check
      _
    $region7: #{forward.1} parent=1 // pred_check_branch
      %20 = sbr.rel (0) target = $region9
    $region8: #{forward.1} parent=1 // pred_region
      _
    $region9: #{forward.1} parent=1 // pred_fallthru
      _
    // Predicated region
    $region10: #{forward.1} parent=1 // pred_check
      _
    $region11: #{forward.1} parent=1 // pred_check_branch
      %22 = sbr.rel (0) target = $region13
    $region12: #{forward.1} parent=1 // pred_region
      _
    $region13: #{forward.1} parent=1 // pred_fallthru
      _
    // Predicated region
    $region14: #{forward.1} parent=1 // pred_check
      _
    $region15: #{forward.1} parent=1 // pred_check_branch
      %24 = sbr.rel (0) target = $region17
    $region16: #{forward.1} parent=1 // pred_region
      %26 = vsyncadd [#allocation4], 0
      %s27 = sshll.u32 %s3, 4
      %s28 = int_to_ptr.hbm [resolvable:$true] %s27
      %s29 = sshll.u32 [#allocation3], 4
      %s30 = int_to_ptr.vmem [resolvable:$true] %s29
      %35 = dma.hbm_to_vmem [thread:$0]  %s28, 512, %s30, [#allocation4], 128, 128, 8
    $region17: #{forward.1} parent=1 // pred_fallthru
      _
    // Predicated region
    $region18: #{forward.1} parent=1 // pred_check
      _
    $region19: #{forward.1} parent=1 // pred_check_branch
      %37 = sbr.rel (0) target = $region21
    $region20: #{forward.1} parent=1 // pred_region
      _
    $region21: #{forward.1} parent=1 // pred_fallthru
      _
    // Predicated region
    $region22: #{forward.1} parent=1 // pred_check
      _
    $region23: #{forward.1} parent=1 // pred_check_branch
      %39 = sbr.rel (0) target = $region25
    $region24: #{forward.1} parent=1 // pred_region
      %41 = vsyncadd [#allocation7], 0
      %s42 = sshll.u32 %s5, 4
      %s43 = int_to_ptr.hbm [resolvable:$true] %s42
      %s44 = sshll.u32 [#allocation6], 4
      %s45 = int_to_ptr.vmem [resolvable:$true] %s44
      %50 = dma.hbm_to_vmem [thread:$0]  %s43, 2048, %s45, [#allocation7], 128, 128, 8
    $region25: #{forward.1} parent=1 // pred_fallthru
      _
    // Predicated region
    $region26: #{forward.1} parent=1 // pred_check
      _
    $region27: #{forward.1} parent=1 // pred_check_branch
      %52 = sbr.rel (0) target = $region29
    $region28: #{forward.1} parent=1 // pred_region
      _
    $region29: #{forward.1} parent=1 // pred_fallthru
      _
    // Predicated region
    $region30: #{forward.1} parent=1 // pred_check
      _
    $region31: #{forward.1} parent=1 // pred_check_branch
      %54 = sbr.rel (0) target = $region33
    $region32: #{forward.1} parent=1 // pred_region
      %56 = dma.done [#allocation4], 512
    $region33: #{forward.1} parent=1 // pred_fallthru
      _
    // Predicated region
    $region34: #{forward.1} parent=1 // pred_check
      _
    $region35: #{forward.1} parent=1 // pred_check_branch
      %58 = sbr.rel (0) target = $region37
    $region36: #{forward.1} parent=1 // pred_region
      %60 = dma.done [#allocation7], 2048
    $region37: #{forward.1} parent=1 // pred_fallthru
      _
    %p61 = scmp.eq.s32.totalorder 0, 0
    // Predicated region
    $region38: #{forward.1} parent=1 // pred_check
      %p62 = pneg %p61
    $region39: #{forward.1} parent=1 // pred_check_branch
      %64 = sbr.rel (%p62) target = $region41
    $region40: #{forward.1} parent=1 // pred_region
      %v65 = vld [vmem:[%s1] sm:$0xff]
      %v66 = vld [vmem:[%s1 + $0x8] sm:$0xff]
      %vm67 = vcmask 261120
      %68 = vst.msk [vmem:[%s8] sm:$0xff] %vm67, %v65
      %69 = vst.msk [vmem:[%s8 + $0x8] sm:$0xff] %vm67, %v66
    $region41: #{forward.1} parent=1 // pred_fallthru
      _
    %v70 = vld [vmem:[%s8] sm:$0xff]
    %s71 = scalar_lea.vmem %s8, 8
    %v72 = vld [vmem:[%s71] sm:$0xff]
    %v73 = vld [vmem:[%s0] sm:$0xff]
    %v74 = vld [vmem:[%s2] sm:$0xff]
    %v75 = vld [vmem:[%s2 + $0x8] sm:$0xff]
    %v76 = vld [vmem:[%s2 + $0x10] sm:$0xff]
    %v77 = vld [vmem:[%s2 + $0x18] sm:$0xff]
    %v78 = vld [vmem:[#allocation3] sm:$0xff]
    %v79 = vld [vmem:[#allocation3 + $0x8] sm:$0xff]
    %v80 = vld [vmem:[#allocation3 + $0x10] sm:$0xff]
    %v81 = vld [vmem:[#allocation3 + $0x18] sm:$0xff]
    %vm82 = vcmask 261120
    %v84 = vsel %vm82, %v70, 0
    %86 = vmatpush.msra.mxu0 0.0
    %87 = vmatpush.msra.mxu0 0.0
    %88 = vmatpush.msra.mxu0 0.0
    %89 = vmatpush.msra.mxu0 0.0
    %90 = vmatpush.msra.mxu0 0.0
    %91 = vmatpush.msra.mxu0 0.0
    %92 = vmatpush.msra.mxu0 0.0
    %93 = vmatpush.msra.mxu0 0.0
    %94 = vmatpush.msra.mxu0 0.0
    %95 = vmatpush.msra.mxu0 0.0
    %96 = vmatpush.msra.mxu0 0.0
    %97 = vmatpush.msra.mxu0 0.0
    %98 = vmatpush.msra.mxu0 %v81
    %99 = vmatpush.msra.mxu0 %v80
    %100 = vmatpush.msra.mxu0 %v79
    %101 = vmatpush.msra.mxu0 %v78
    %102 = vmatmul.f32.gmra.mxu0 %v84
    %v103 = vpop.f32.mrf.mxu0
    %v104 = vadd.f32 0.0, %v103
    %105 = vdwg.mxu0
    %v107 = vsel %vm82, %v73, 0
    %109 = vmatpush.msra.mxu0 0.0
    %110 = vmatpush.msra.mxu0 0.0
    %111 = vmatpush.msra.mxu0 0.0
    %112 = vmatpush.msra.mxu0 0.0
    %113 = vmatpush.msra.mxu0 0.0
    %114 = vmatpush.msra.mxu0 0.0
    %115 = vmatpush.msra.mxu0 0.0
    %116 = vmatpush.msra.mxu0 0.0
    %117 = vmatpush.msra.mxu0 0.0
    %118 = vmatpush.msra.mxu0 0.0
    %119 = vmatpush.msra.mxu0 0.0
    %120 = vmatpush.msra.mxu0 0.0
    %121 = vmatpush.msra.mxu0 %v77
    %122 = vmatpush.msra.mxu0 %v76
    %123 = vmatpush.msra.mxu0 %v75
    %124 = vmatpush.msra.mxu0 %v74
    %125 = vmatmul.f32.gmra.mxu0 %v107
    %v126 = vpop.f32.mrf.mxu0
    %v127 = vadd.f32 %v104, %v126
    %128 = vdwg.mxu0
    %v129 = vld [vmem:[%s4] sm:$0x1]
    %v131 = vperm.slane %v129, 0
    %v133 = vadd.f32 %v127, %v131
    %v134 = vmul.f32 %v133, 0.5
    %v135 = vtanh.pop %v134
    %v136 = vadd.f32 %v135, 1.0
    %v137 = vmul.f32 %v136, 0.5
    %v138 = vtanh.pop %v133
    %140 = vrot.lane.b32.xlu0 %v72, 32
    %v141 = vpop.permute.xlu0 %140
    %v143 = vmul.f32 %v137, %v141
    %145 = vrot.lane.b32.xlu0 %v138, 64
    %v146 = vpop.permute.xlu0 %145
    %v148 = vmul.f32 %v137, %v146
    %150 = vrot.lane.b32.xlu0 %v148, 32
    %v151 = vpop.permute.xlu0 %150
    %v153 = vadd.f32 %v143, %v151
    %v154 = vtanh.pop %v153
    %156 = vrot.lane.b32.xlu0 %v154, 64
    %v157 = vpop.permute.xlu0 %156
    %v159 = vmul.f32 %v137, %v157
    %161 = vrot.lane.b32.xlu0 %v159, 32
    %v162 = vpop.permute.xlu0 %161
    %164 = vst.msk [vmem:[%s8] sm:$0xff] %vm82, %v162
    %166 = vrot.lane.b32.xlu0 %v153, 96
    %v167 = vpop.permute.xlu0 %166
    %169 = vst.msk [vmem:[%s71] sm:$0xff] %vm82, %v167
    %170 = vst.msk [vmem:[#allocation2] sm:$0xff] %vm82, %v162
    %v171 = vld [vmem:[#allocation2] sm:$0xff]
    %v172 = vld [vmem:[#allocation6] sm:$0xff]
    %v173 = vld [vmem:[#allocation6 + $0x8] sm:$0xff]
    %v174 = vld [vmem:[#allocation6 + $0x10] sm:$0xff]
    %v175 = vld [vmem:[#allocation6 + $0x18] sm:$0xff]
    %v176 = vld [vmem:[%s6] sm:$0x1]
    %v178 = vperm.slane %v176, 0
    %v181 = vsel %vm82, %v171, 0
    %183 = vmatpush.msra.mxu0 0.0
    %184 = vmatpush.msra.mxu0 0.0
    %185 = vmatpush.msra.mxu0 0.0
    %186 = vmatpush.msra.mxu0 0.0
    %187 = vmatpush.msra.mxu0 0.0
    %188 = vmatpush.msra.mxu0 0.0
    %189 = vmatpush.msra.mxu0 0.0
    %190 = vmatpush.msra.mxu0 0.0
    %191 = vmatpush.msra.mxu0 0.0
    %192 = vmatpush.msra.mxu0 0.0
    %193 = vmatpush.msra.mxu0 0.0
    %194 = vmatpush.msra.mxu0 0.0
    %195 = vmatpush.msra.mxu0 %v175
    %196 = vmatpush.msra.mxu0 %v174
    %197 = vmatpush.msra.mxu0 %v173
    %198 = vmatpush.msra.mxu0 %v172
    %199 = vmatmul.f32.gmra.mxu0 %v181
    %v200 = vpop.f32.mrf.mxu0
    %v201 = vadd.f32 %v178, %v200
    %202 = vdwg.mxu0
    %vm203 = vcmp.gt.f32.partialorder %v201, 0.0
    %v204 = vmin.f32 %v201, 0.0
    %v205 = vmul.f32 %v204, 1.442695
    %v206 = vpow.pop %v205
    %v207 = vsub.f32 %v206, 1.0
    %v208 = vsel %vm203, %v201, %v207
    %s209 = scalar_lea.vmem [#allocation6], 32
    %v210 = vld [vmem:[%s209] sm:$0xff]
    %v211 = vld [vmem:[%s209 + $0x8] sm:$0xff]
    %v212 = vld [vmem:[%s209 + $0x10] sm:$0xff]
    %v213 = vld [vmem:[%s209 + $0x18] sm:$0xff]
    %s214 = scalar_lea.vmem %s6, 1
    %v215 = vld [vmem:[%s214] sm:$0x1]
    %v217 = vperm.slane %v215, 0
    %v220 = vsel %vm82, %v208, 0
    %222 = vmatpush.msra.mxu0 0.0
    %223 = vmatpush.msra.mxu0 0.0
    %224 = vmatpush.msra.mxu0 0.0
    %225 = vmatpush.msra.mxu0 0.0
    %226 = vmatpush.msra.mxu0 0.0
    %227 = vmatpush.msra.mxu0 0.0
    %228 = vmatpush.msra.mxu0 0.0
    %229 = vmatpush.msra.mxu0 0.0
    %230 = vmatpush.msra.mxu0 0.0
    %231 = vmatpush.msra.mxu0 0.0
    %232 = vmatpush.msra.mxu0 0.0
    %233 = vmatpush.msra.mxu0 0.0
    %234 = vmatpush.msra.mxu0 %v213
    %235 = vmatpush.msra.mxu0 %v212
    %236 = vmatpush.msra.mxu0 %v211
    %237 = vmatpush.msra.mxu0 %v210
    %238 = vmatmul.f32.gmra.mxu0 %v220
    %v239 = vpop.f32.mrf.mxu0
    %v240 = vadd.f32 %v217, %v239
    %241 = vdwg.mxu0
    %vm242 = vcmp.gt.f32.partialorder %v240, 0.0
    %v243 = vmin.f32 %v240, 0.0
    %v244 = vmul.f32 %v243, 1.442695
    %v245 = vpow.pop %v244
    %v246 = vsub.f32 %v245, 1.0
    %v247 = vsel %vm242, %v240, %v246
    %s248 = scalar_lea.vmem [#allocation6], 64
    %v249 = vld [vmem:[%s248] sm:$0xff]
    %v250 = vld [vmem:[%s248 + $0x8] sm:$0xff]
    %v251 = vld [vmem:[%s248 + $0x10] sm:$0xff]
    %v252 = vld [vmem:[%s248 + $0x18] sm:$0xff]
    %s253 = scalar_lea.vmem %s6, 2
    %v254 = vld [vmem:[%s253] sm:$0x1]
    %v256 = vperm.slane %v254, 0
    %v259 = vsel %vm82, %v247, 0
    %261 = vmatpush.msra.mxu0 0.0
    %262 = vmatpush.msra.mxu0 0.0
    %263 = vmatpush.msra.mxu0 0.0
    %264 = vmatpush.msra.mxu0 0.0
    %265 = vmatpush.msra.mxu0 0.0
    %266 = vmatpush.msra.mxu0 0.0
    %267 = vmatpush.msra.mxu0 0.0
    %268 = vmatpush.msra.mxu0 0.0
    %269 = vmatpush.msra.mxu0 0.0
    %270 = vmatpush.msra.mxu0 0.0
    %271 = vmatpush.msra.mxu0 0.0
    %272 = vmatpush.msra.mxu0 0.0
    %273 = vmatpush.msra.mxu0 %v252
    %274 = vmatpush.msra.mxu0 %v251
    %275 = vmatpush.msra.mxu0 %v250
    %276 = vmatpush.msra.mxu0 %v249
    %277 = vmatmul.f32.gmra.mxu0 %v259
    %v278 = vpop.f32.mrf.mxu0
    %v279 = vadd.f32 %v256, %v278
    %280 = vdwg.mxu0
    %vm281 = vcmp.gt.f32.partialorder %v279, 0.0
    %v282 = vmin.f32 %v279, 0.0
    %v283 = vmul.f32 %v282, 1.442695
    %v284 = vpow.pop %v283
    %v285 = vsub.f32 %v284, 1.0
    %v286 = vsel %vm281, %v279, %v285
    %s287 = scalar_lea.vmem [#allocation6], 96
    %v288 = vld [vmem:[%s287] sm:$0xff]
    %v289 = vld [vmem:[%s287 + $0x8] sm:$0xff]
    %v290 = vld [vmem:[%s287 + $0x10] sm:$0xff]
    %v291 = vld [vmem:[%s287 + $0x18] sm:$0xff]
    %s292 = scalar_lea.vmem %s6, 3
    %v293 = vld [vmem:[%s292] sm:$0x1]
    %v295 = vperm.slane %v293, 0
    %v298 = vsel %vm82, %v286, 0
    %300 = vmatpush.msra.mxu0 0.0
    %301 = vmatpush.msra.mxu0 0.0
    %302 = vmatpush.msra.mxu0 0.0
    %303 = vmatpush.msra.mxu0 0.0
    %304 = vmatpush.msra.mxu0 0.0
    %305 = vmatpush.msra.mxu0 0.0
    %306 = vmatpush.msra.mxu0 0.0
    %307 = vmatpush.msra.mxu0 0.0
    %308 = vmatpush.msra.mxu0 0.0
    %309 = vmatpush.msra.mxu0 0.0
    %310 = vmatpush.msra.mxu0 0.0
    %311 = vmatpush.msra.mxu0 0.0
    %312 = vmatpush.msra.mxu0 %v291
    %313 = vmatpush.msra.mxu0 %v290
    %314 = vmatpush.msra.mxu0 %v289
    %315 = vmatpush.msra.mxu0 %v288
    %316 = vmatmul.f32.gmra.mxu0 %v298
    %v317 = vpop.f32.mrf.mxu0
    %v318 = vadd.f32 %v295, %v317
    %319 = vdwg.mxu0
    %320 = vst.msk [vmem:[#allocation8] sm:$0xff] %vm82, %v318
    // Predicated region
    $region42: #{forward.1} parent=1 // pred_check
      _
    $region43: #{forward.1} parent=1 // pred_check_branch
      %322 = sbr.rel (0) target = $region45
    $region44: #{forward.1} parent=1 // pred_region
      %324 = vsyncadd [#allocation5], 0
      %s326 = sshll.u32 [#allocation8], 4
      %s327 = int_to_ptr.vmem [resolvable:$true] %s326
      %s328 = sshll.u32 %s7, 4
      %s329 = int_to_ptr.hbm [resolvable:$true] %s328
      %331 = dma.vmem_to_hbm [thread:$0]  %s327, 128, %s329, [#allocation5]
    $region45: #{forward.1} parent=1 // pred_fallthru
      _
    // Predicated region
    $region46: #{forward.1} parent=1 // pred_check
      _
    $region47: #{forward.1} parent=1 // pred_check_branch
      %333 = sbr.rel (0) target = $region49
    $region48: #{forward.1} parent=1 // pred_region
      _
    $region49: #{forward.1} parent=1 // pred_fallthru
      _
    // Predicated region
    $region50: #{forward.1} parent=1 // pred_check
      _
    $region51: #{forward.1} parent=1 // pred_check_branch
      %335 = sbr.rel (0) target = $region53
    $region52: #{forward.1} parent=1 // pred_region
      %337 = dma.done [#allocation5], 128
    $region53: #{forward.1} parent=1 // pred_fallthru
      _
    // Predicated region
    $region54: #{forward.1} parent=1 // pred_check
      _
    $region55: #{forward.1} parent=1 // pred_check_branch
      %339 = sbr.rel (0) target = $region57
    $region56: #{forward.1} parent=1 // pred_region
      _
    $region57: #{forward.1} parent=1 // pred_fallthru
      _
    %340 = vsyncpa [#allocation4], 1
    %341 = vsyncpa [#allocation7], 1
    %342 = vsyncpa [#allocation5], 1

</llo_original>
